<compile_context>
chip_gen: v7x
topology: tpu7x:2x2x1
jax: 0.10.0
libtpu: 0.0.40
codegen_flags: <defaults>
</compile_context>

<pallas_src>
import jax
import jax.numpy as jnp
from jax.experimental import pallas as pl
from jax.experimental.pallas import tpu as pltpu

_SELU_ALPHA = 1.6732632423543772
_SELU_SCALE = 1.0507009873554805


def _selu(z):
    return _SELU_SCALE * jnp.where(z > 0, z, _SELU_ALPHA * (jnp.exp(z) - 1.0))


# ---- Stage 1: P = SELU(x @ W0 + b0) @ Wg0  (Linear -> SELU -> [dropout=id] -> GCN-1 proj) ----
def _embed_project_kernel(x_ref, w0_ref, b0_ref, wg_ref, o_ref):
    h0 = jnp.dot(x_ref[...], w0_ref[...], preferred_element_type=jnp.float32)
    h0 = _selu(h0 + b0_ref[...])
    # TODO(synk): dropout(p=0.5) is stochastic in training mode; identity here (eval semantics).
    o_ref[...] = jnp.dot(h0.astype(wg_ref.dtype), wg_ref[...],
                         preferred_element_type=jnp.float32).astype(o_ref.dtype)


# ---- Stage 2..L-1: P_next = (A @ P + b) @ W_next  (GCN propagate+bias -> next GCN proj) ----
def _gcn_project_kernel(a_ref, p_ref, b_ref, w_ref, o_ref, acc_ref):
    k = pl.program_id(1)

    @pl.when(k == 0)
    def _():
        acc_ref[...] = jnp.zeros_like(acc_ref)

    acc_ref[...] += jnp.dot(a_ref[...], p_ref[...], preferred_element_type=jnp.float32)

    @pl.when(k == pl.num_programs(1) - 1)
    def _():
        h = acc_ref[...] + b_ref[...]
        # TODO(synk): dropout between GCN layers is identity (eval semantics).
        o_ref[...] = jnp.dot(h.astype(w_ref.dtype), w_ref[...],
                             preferred_element_type=jnp.float32).astype(o_ref.dtype)


# ---- Final stage: OUT = A @ P + b  (last GCN propagate + bias) ----
def _gcn_final_kernel(a_ref, p_ref, b_ref, o_ref, acc_ref):
    k = pl.program_id(1)

    @pl.when(k == 0)
    def _():
        acc_ref[...] = jnp.zeros_like(acc_ref)

    acc_ref[...] += jnp.dot(a_ref[...], p_ref[...], preferred_element_type=jnp.float32)

    @pl.when(k == pl.num_programs(1) - 1)
    def _():
        o_ref[...] = (acc_ref[...] + b_ref[...]).astype(o_ref.dtype)


def _round_up(v, m):
    return ((v + m - 1) // m) * m


def _pad2d(a, rows, cols):
    return jnp.pad(a, ((0, rows - a.shape[0]), (0, cols - a.shape[1])))


def _pad_bias(b, cols):
    return jnp.pad(b, (0, cols - b.shape[0])).reshape(1, cols).astype(jnp.float32)


def egcn_forward(a_norm, x, params, *, tile_m=128, matmul_dtype=jnp.bfloat16):
    """params: w0/b0 (Linear, (in,out) layout), gcn_w (list), gcn_b (list)."""
    n, in_c = x.shape
    md = matmul_dtype

    n_pad = _round_up(n, max(tile_m, 128))
    in_pad = _round_up(in_c, 128)
    e_pad = _round_up(params["w0"].shape[1], 128)

    # K-chunk for the A @ H reductions (multiple of 128 dividing n_pad).
    tk = 128
    for cand in (1024, 512, 256):
        if n_pad % cand == 0:
            tk = cand
            break
    n_row = n_pad // tile_m
    n_k = n_pad // tk

    x_p = _pad2d(x, n_pad, in_pad).astype(md)
    a_p = _pad2d(a_norm, n_pad, n_pad).astype(md)
    w0 = _pad2d(params["w0"], in_pad, e_pad).astype(md)
    b0 = _pad_bias(params["b0"], e_pad)

    gcn_w = params["gcn_w"]
    gcn_b = params["gcn_b"]
    n_gcn = len(gcn_w)
    widths = [_round_up(w.shape[1], 128) for w in gcn_w]   # padded output width of each GCN layer
    wg = [_pad2d(gcn_w[0], e_pad, widths[0]).astype(md)]
    for j in range(1, n_gcn):
        wg.append(_pad2d(gcn_w[j], widths[j - 1], widths[j]).astype(md))
    bg = [_pad_bias(gcn_b[j], widths[j]) for j in range(n_gcn)]

    par = pltpu.CompilerParams(dimension_semantics=("parallel",))
    par_arb = pltpu.CompilerParams(dimension_semantics=("parallel", "arbitrary"))

    # Stage 1: P = SELU(x @ W0 + b0) @ Wg0   -> lane-dense [n_pad, widths[0]] (matmul dtype)
    p = pl.pallas_call(
        _embed_project_kernel,
        out_shape=jax.ShapeDtypeStruct((n_pad, widths[0]), md),
        grid=(n_row,),
        in_specs=[
            pl.BlockSpec((tile_m, in_pad), lambda i: (i, 0)),
            pl.BlockSpec((in_pad, e_pad), lambda i: (0, 0)),
            pl.BlockSpec((1, e_pad), lambda i: (0, 0)),
            pl.BlockSpec((e_pad, widths[0]), lambda i: (0, 0)),
        ],
        out_specs=pl.BlockSpec((tile_m, widths[0]), lambda i: (i, 0)),
        compiler_params=par,
    )(x_p, w0, b0, wg[0])

    # Middle stages: P <- (A @ P + bg[j]) @ Wg[j+1]
    for j in range(n_gcn - 1):
        c_in, c_out = widths[j], widths[j + 1]
        p = pl.pallas_call(
            _gcn_project_kernel,
            out_shape=jax.ShapeDtypeStruct((n_pad, c_out), md),
            grid=(n_row, n_k),
            in_specs=[
                pl.BlockSpec((tile_m, tk), lambda i, k: (i, k)),
                pl.BlockSpec((tk, c_in), lambda i, k: (k, 0)),
                pl.BlockSpec((1, c_in), lambda i, k: (0, 0)),
                pl.BlockSpec((c_in, c_out), lambda i, k: (0, 0)),
            ],
            out_specs=pl.BlockSpec((tile_m, c_out), lambda i, k: (i, 0)),
            scratch_shapes=[pltpu.VMEM((tile_m, c_in), jnp.float32)],
            compiler_params=par_arb,
        )(a_p, p, bg[j], wg[j + 1])

    # Final stage: OUT = A @ P + bg[-1]
    c_out = widths[-1]
    out = pl.pallas_call(
        _gcn_final_kernel,
        out_shape=jax.ShapeDtypeStruct((n_pad, c_out), jnp.float32),
        grid=(n_row, n_k),
        in_specs=[
            pl.BlockSpec((tile_m, tk), lambda i, k: (i, k)),
            pl.BlockSpec((tk, c_out), lambda i, k: (k, 0)),
            pl.BlockSpec((1, c_out), lambda i, k: (0, 0)),
        ],
        out_specs=pl.BlockSpec((tile_m, c_out), lambda i, k: (i, 0)),
        scratch_shapes=[pltpu.VMEM((tile_m, c_out), jnp.float32)],
        compiler_params=par_arb,
    )(a_p, p, bg[-1])

    return out[:n, :gcn_w[-1].shape[1]]


if __name__ == "__main__":
    # Small shapes consistent with EGCN(in_channels, out_channels, embedding_dim, n_gcn=2, n_hidden_gcn=64)
    N, IN_C, EMB, HID, OUT_C = 250, 64, 256, 64, 8   # N deliberately not a multiple of 128
    key = jax.random.PRNGKey(0)
    keys = jax.random.split(key, 10)

    x = jax.random.normal(keys[0], (N, IN_C), jnp.float32)

    # Glue: dense GCN-normalized adjacency D^-1/2 (A + I) D^-1/2 with unit edge weights
    # (equivalent to GCNConv's gcn_norm with add_self_loops=True).
    adj = jax.random.bernoulli(keys[1], 0.05, (N, N)).astype(jnp.float32)
    adj = jnp.maximum(adj, adj.T)
    adj = adj * (1.0 - jnp.eye(N, dtype=jnp.float32)) + jnp.eye(N, dtype=jnp.float32)
    deg = jnp.sum(adj, axis=1)
    dinv = 1.0 / jnp.sqrt(deg)
    a_norm = dinv[:, None] * adj * dinv[None, :]

    s = 0.1
    params = dict(
        w0=s * jax.random.normal(keys[2], (IN_C, EMB), jnp.float32),
        b0=s * jax.random.normal(keys[3], (EMB,), jnp.float32),
        gcn_w=[s * jax.random.normal(keys[4], (EMB, HID), jnp.float32),
               s * jax.random.normal(keys[5], (HID, OUT_C), jnp.float32)],
        gcn_b=[s * jax.random.normal(keys[6], (HID,), jnp.float32),
               s * jax.random.normal(keys[7], (OUT_C,), jnp.float32)],
    )

    out = egcn_forward(a_norm, x, params)
    jax.block_until_ready(out)

    # Pure-JAX reference (eval-mode EGCN forward).
    h0 = _selu(x @ params["w0"] + params["b0"])
    h1 = a_norm @ (h0 @ params["gcn_w"][0]) + params["gcn_b"][0]
    ref = a_norm @ (h1 @ params["gcn_w"][1]) + params["gcn_b"][1]

    assert out.shape == (N, OUT_C) and out.dtype == jnp.float32
    err = float(jnp.max(jnp.abs(out - ref)))
    assert err < 5e-2, f"max abs err {err}"
    print("KERNEL_OK")
</pallas_src>

<mosaic_0001>
module attributes {stable_mosaic.version = 11 : i64} {
  func.func @_embed_project_kernel(%arg0: i32, %arg1: memref<128x128xbf16, #tpu.memory_space<vmem>>, %arg2: memref<128x256xbf16, #tpu.memory_space<vmem>>, %arg3: memref<1x256xf32, #tpu.memory_space<vmem>>, %arg4: memref<256x128xbf16, #tpu.memory_space<vmem>>, %arg5: memref<128x128xbf16, #tpu.memory_space<vmem>>) attributes {dimension_semantics = [#tpu.dimension_semantics<parallel>], iteration_bounds = array<i64: 2>, scalar_prefetch = 0 : i64, scratch_operands = 0 : i64, tpu.core_type = #tpu.core_type<tc>, window_params = [{transform_indices = @transform_0, window_bounds = array<i64: 128, 128>}, {pipeline_mode = #tpu.pipeline_mode<synchronous>, transform_indices = @transform_1, window_bounds = array<i64: 128, 256>}, {pipeline_mode = #tpu.pipeline_mode<synchronous>, transform_indices = @transform_2, window_bounds = array<i64: 1, 256>}, {pipeline_mode = #tpu.pipeline_mode<synchronous>, transform_indices = @transform_3, window_bounds = array<i64: 256, 128>}, {transform_indices = @transform_4, window_bounds = array<i64: 128, 128>}]} {
    %c0 = arith.constant 0 : index
    %c0_0 = arith.constant 0 : index
    %0 = vector.load %arg1[%c0, %c0_0] : memref<128x128xbf16, #tpu.memory_space<vmem>>, vector<128x128xbf16>
    %c0_1 = arith.constant 0 : index
    %c0_2 = arith.constant 0 : index
    %1 = vector.load %arg2[%c0_1, %c0_2] : memref<128x256xbf16, #tpu.memory_space<vmem>>, vector<128x256xbf16>
    %cst = arith.constant dense<0.000000e+00> : vector<128x256xf32>
    %2 = tpu.matmul %0, %1, %cst {dimension_numbers = #tpu.dot_dimension_numbers<[1], [0], [0], [1], [0, 0, 1, 1], [], []>} : vector<128x128xbf16>, vector<128x256xbf16>, vector<128x256xf32> -> vector<128x256xf32>
    %c0_3 = arith.constant 0 : index
    %c0_4 = arith.constant 0 : index
    %3 = vector.load %arg3[%c0_3, %c0_4] : memref<1x256xf32, #tpu.memory_space<vmem>>, vector<1x256xf32>
    %4 = vector.broadcast %3 : vector<1x256xf32> to vector<128x256xf32>
    %5 = arith.addf %2, %4 : vector<128x256xf32>
    %cst_5 = arith.constant 0.000000e+00 : f32
    %6 = vector.broadcast %cst_5 : f32 to vector<128x256xf32>
    %7 = arith.cmpf ogt, %5, %6 : vector<128x256xf32>
    %8 = math.exp %5 : vector<128x256xf32>
    %cst_6 = arith.constant 1.000000e+00 : f32
    %9 = vector.broadcast %cst_6 : f32 to vector<128x256xf32>
    %10 = arith.subf %8, %9 : vector<128x256xf32>
    %cst_7 = arith.constant 1.67326319 : f32
    %11 = vector.broadcast %cst_7 : f32 to vector<128x256xf32>
    %12 = arith.mulf %11, %10 : vector<128x256xf32>
    %13 = arith.select %7, %5, %12 : vector<128x256xi1>, vector<128x256xf32>
    %cst_8 = arith.constant 1.05070102 : f32
    %14 = vector.broadcast %cst_8 : f32 to vector<128x256xf32>
    %15 = arith.mulf %14, %13 : vector<128x256xf32>
    %16 = arith.truncf %15 : vector<128x256xf32> to vector<128x256xbf16>
    %c0_9 = arith.constant 0 : index
    %c0_10 = arith.constant 0 : index
    %17 = vector.load %arg4[%c0_9, %c0_10] : memref<256x128xbf16, #tpu.memory_space<vmem>>, vector<256x128xbf16>
    %cst_11 = arith.constant dense<0.000000e+00> : vector<128x128xf32>
    %18 = tpu.matmul %16, %17, %cst_11 {dimension_numbers = #tpu.dot_dimension_numbers<[1], [0], [0], [1], [0, 0, 1, 1], [], []>} : vector<128x256xbf16>, vector<256x128xbf16>, vector<128x128xf32> -> vector<128x128xf32>
    %19 = arith.truncf %18 : vector<128x128xf32> to vector<128x128xbf16>
    %c0_12 = arith.constant 0 : index
    %c0_13 = arith.constant 0 : index
    %20 = vector.load %arg5[%c0_12, %c0_13] : memref<128x128xbf16, #tpu.memory_space<vmem>>, vector<128x128xbf16>
    tpu.vector_store %arg5[%c0_12, %c0_13], %19 {strides = array<i32>} : memref<128x128xbf16, #tpu.memory_space<vmem>>, vector<128x128xbf16>,
    return
  }
  func.func @transform_0(%arg0: i32) -> (i32, i32) {
    %c0_i32 = arith.constant 0 : i32
    %c0_i32_0 = arith.constant 0 : i32
    return %arg0, %c0_i32 : i32, i32
  }
  func.func @transform_1(%arg0: i32) -> (i32, i32) {
    %c0_i32 = arith.constant 0 : i32
    %c0_i32_0 = arith.constant 0 : i32
    %c0_i32_1 = arith.constant 0 : i32
    return %c0_i32, %c0_i32_0 : i32, i32
  }
  func.func @transform_2(%arg0: i32) -> (i32, i32) {
    %c0_i32 = arith.constant 0 : i32
    %c0_i32_0 = arith.constant 0 : i32
    %c0_i32_1 = arith.constant 0 : i32
    return %c0_i32, %c0_i32_0 : i32, i32
  }
  func.func @transform_3(%arg0: i32) -> (i32, i32) {
    %c0_i32 = arith.constant 0 : i32
    %c0_i32_0 = arith.constant 0 : i32
    %c0_i32_1 = arith.constant 0 : i32
    return %c0_i32, %c0_i32_0 : i32, i32
  }
  func.func @transform_4(%arg0: i32) -> (i32, i32) {
    %c0_i32 = arith.constant 0 : i32
    %c0_i32_0 = arith.constant 0 : i32
    return %arg0, %c0_i32 : i32, i32
  }
}

</mosaic_0001>

<llo_original>
// kernel: tpu_custom_call.1
$region0: #{tpu_custom_call.1}
  #allocation0 [shape = 'u32[]', space=smem, size = 0x4, offset = 0x4, fixed_abs, tag = 'smem constant byte address 0x4 - core index']
  #allocation1 [shape = 'u32[144,128]{1,0:T(1,128)}', space=vmem, size = 0x12000, scoped, tag = 'internal scratch']
  %s0 = inlined_call_operand.hbm [shape: bf16[256,128], index: 0, kind: input, shape index: {}]
  %s1 = inlined_call_operand.hbm [shape: bf16[128,256], index: 1, kind: input, shape index: {}]
  %s2 = inlined_call_operand.vmem [shape: f32[1,256], index: 2, kind: input, shape index: {}]
  %s3 = inlined_call_operand.hbm [shape: bf16[256,128], index: 3, kind: input, shape index: {}]
  %s4 = inlined_call_operand.hbm [shape: bf16[256,128], index: 4, kind: output, shape index: {}]
  %s5 = sld [smem:[#allocation0]]
  $region61: #{tpu_custom_call.1} parent=0
    _
  %s7 = ssub.s32 1, %s5
  %s8 = scalar_select 0, %s7, %s5
  $region1: #{tpu_custom_call.1} parent=0
    #allocation2 [shape = 'u8[65536]{0}', space=vmem, size = 0x10000, scoped, tag = 'input window, operand 0']
    #allocation3 [shape = 's32[2]{0}', space=sflag, size = 0x8, scoped, tag = 'scoped memory for tpu_custom_call.1']
    #allocation4 [shape = 's32[2]{0}', space=sflag, size = 0x8, scoped, tag = 'scoped memory for tpu_custom_call.1']
    #allocation5 [shape = 'u8[65536]{0}', space=vmem, size = 0x10000, scoped, tag = 'input window, operand 1, single buffered']
    #allocation6 [shape = 's32[1]{0}', space=sflag, size = 0x4, scoped, tag = 'scoped memory for tpu_custom_call.1']
    #allocation7 [shape = 'u8[65536]{0}', space=vmem, size = 0x10000, scoped, tag = 'input window, operand 3, single buffered']
    #allocation8 [shape = 'u8[65536]{0}', space=vmem, size = 0x10000, scoped, tag = 'output window, operand 0']
    %9 = vsyncpa [#allocation3], 0
    %s10 = scalar_lea.sflag [#allocation3], 1
    %11 = vsyncpa %s10, 0
    %12 = vsyncpa [#allocation6], 0
    %13 = vsyncpa [#allocation4], 0
    %s14 = scalar_lea.sflag [#allocation4], 1
    %15 = vsyncpa %s14, 0
    loop: start=0, step=1, limit=4
    $region2: #{tpu_custom_call.1} parent=1 // loop_pre_header
      _
    $region3: #{tpu_custom_call.1} parent=1 // loop_header
      %s17 = sphi 0, %s21
      %p18 = scmp.ge.s32.totalorder %s17, 4
      %s27 = sphi 0, %s29
      %s30 = sphi 0, %s27
      %s31 = sphi 0, %s30
      %s47 = sphi 0, %s31
      %s51 = sphi 0, %s51
      %s53 = sphi 0, %s51
      %s54 = sphi 0, %s53
      %s68 = sphi 0, %s54
      %s72 = sphi 0, %s72
      %s74 = sphi 0, %s72
      %s75 = sphi 0, %s74
      %s89 = sphi 0, %s75
      %s93 = sphi 0, %s93
      %s95 = sphi 0, %s93
      %s96 = sphi 0, %s95
      %s110 = sphi 0, %s96
      %s116 = sphi 0, %s118
      %s119 = sphi 0, %s116
      %s120 = sphi 0, %s119
      %s136 = sphi 0, %s120
    $region4: #{tpu_custom_call.1} parent=1 // loop_header_branch
      %20 = sbr.rel (%p18) target = $region8
    $region5: #{tpu_custom_call.1} parent=1 // loop_body
      %s22 = ssub.s32 %s17, 1
      %s23 = ssub.s32 %s17, 2
      %s24 = sadd.s32 %s17, 1
      %s25 = ssub.s32 %s17, %s24
      %p26 = scmp.eq.s32.totalorder %s25, 0
      %s28 = sadd.s32 %s27, 1
      %s29 = scalar_select %p26, %s27, %s28
      %p32 = pneg %p26
      %p33 = scmp.eq.s32.totalorder %s17, 1
      %p34 = por %p32, %p33
      %p35 = scmp.ne.s32.totalorder %s27, %s30
      %p36 = scmp.eq.s32.totalorder %s17, 0
      %p37 = por %p35, %p36
      %p38 = scmp.ne.s32.totalorder %s27, %s30
      %p39 = scmp.eq.s32.totalorder %s22, 1
      %p40 = por %p38, %p39
      %p41 = scmp.ne.s32.totalorder %s30, %s31
      %p42 = scmp.eq.s32.totalorder %s22, 0
      %p43 = por %p41, %p42
      %p44 = scmp.ne.s32.totalorder %s30, %s31
      %p45 = scmp.eq.s32.totalorder %s23, 1
      %p46 = por %p44, %p45
      %p48 = scmp.ne.s32.totalorder %s31, %s47
      %p49 = scmp.eq.s32.totalorder %s23, 0
      %p50 = por %p48, %p49
      %s52 = sadd.s32 %s51, 1
      %p55 = scmp.eq.s32.totalorder %s17, 1
      %p56 = scmp.ne.s32.totalorder %s51, %s53
      %p57 = scmp.eq.s32.totalorder %s17, 0
      %p58 = por %p56, %p57
      %p59 = scmp.ne.s32.totalorder %s51, %s53
      %p60 = scmp.eq.s32.totalorder %s22, 1
      %p61 = por %p59, %p60
      %p62 = scmp.ne.s32.totalorder %s53, %s54
      %p63 = scmp.eq.s32.totalorder %s22, 0
      %p64 = por %p62, %p63
      %p65 = scmp.ne.s32.totalorder %s53, %s54
      %p66 = scmp.eq.s32.totalorder %s23, 1
      %p67 = por %p65, %p66
      %p69 = scmp.ne.s32.totalorder %s54, %s68
      %p70 = scmp.eq.s32.totalorder %s23, 0
      %p71 = por %p69, %p70
      %s73 = sadd.s32 %s72, 1
      %p76 = scmp.eq.s32.totalorder %s17, 1
      %p77 = scmp.ne.s32.totalorder %s72, %s74
      %p78 = scmp.eq.s32.totalorder %s17, 0
      %p79 = por %p77, %p78
      %p80 = scmp.ne.s32.totalorder %s72, %s74
      %p81 = scmp.eq.s32.totalorder %s22, 1
      %p82 = por %p80, %p81
      %p83 = scmp.ne.s32.totalorder %s74, %s75
      %p84 = scmp.eq.s32.totalorder %s22, 0
      %p85 = por %p83, %p84
      %p86 = scmp.ne.s32.totalorder %s74, %s75
      %p87 = scmp.eq.s32.totalorder %s23, 1
      %p88 = por %p86, %p87
      %p90 = scmp.ne.s32.totalorder %s75, %s89
      %p91 = scmp.eq.s32.totalorder %s23, 0
      %p92 = por %p90, %p91
      %s94 = sadd.s32 %s93, 1
      %p97 = scmp.eq.s32.totalorder %s17, 1
      %p98 = scmp.ne.s32.totalorder %s93, %s95
      %p99 = scmp.eq.s32.totalorder %s17, 0
      %p100 = por %p98, %p99
      %p101 = scmp.ne.s32.totalorder %s93, %s95
      %p102 = scmp.eq.s32.totalorder %s22, 1
      %p103 = por %p101, %p102
      %p104 = scmp.ne.s32.totalorder %s95, %s96
      %p105 = scmp.eq.s32.totalorder %s22, 0
      %p106 = por %p104, %p105
      %p107 = scmp.ne.s32.totalorder %s95, %s96
      %p108 = scmp.eq.s32.totalorder %s23, 1
      %p109 = por %p107, %p108
      %p111 = scmp.ne.s32.totalorder %s96, %s110
      %p112 = scmp.eq.s32.totalorder %s23, 0
      %p113 = por %p111, %p112
      %s114 = ssub.s32 %s17, %s24
      %p115 = scmp.eq.s32.totalorder %s114, 0
      %s117 = sadd.s32 %s116, 1
      %s118 = scalar_select %p115, %s116, %s117
      %p121 = pneg %p115
      %p122 = scmp.eq.s32.totalorder %s17, 1
      %p123 = por %p121, %p122
      %p124 = scmp.ne.s32.totalorder %s116, %s119
      %p125 = scmp.eq.s32.totalorder %s17, 0
      %p126 = por %p124, %p125
      %p127 = scmp.ne.s32.totalorder %s116, %s119
      %p128 = scmp.eq.s32.totalorder %s22, 1
      %p129 = por %p127, %p128
      %p130 = scmp.ne.s32.totalorder %s119, %s120
      %p131 = scmp.eq.s32.totalorder %s22, 0
      %p132 = por %p130, %p131
      %p133 = scmp.ne.s32.totalorder %s119, %s120
      %p134 = scmp.eq.s32.totalorder %s23, 1
      %p135 = por %p133, %p134
      %p137 = scmp.ne.s32.totalorder %s120, %s136
      %p138 = scmp.eq.s32.totalorder %s23, 0
      %p139 = por %p137, %p138
      %p140 = scmp.le.s32.totalorder 1, %s17
      %p141 = scmp.lt.s32.totalorder %s17, 3
      %p142 = pnand %p140, %p141
      %p143 = pneg %p142
      // Predicated region
      $region9: #{tpu_custom_call.1} parent=5 // pred_check
        _
      $region10: #{tpu_custom_call.1} parent=5 // pred_check_branch
        %145 = sbr.rel (%p142) target = $region12
      $region11: #{tpu_custom_call.1} parent=5 // pred_region
        %s146 = ssub.s32 %s17, 1
        // Predicated region
        $region13: #{tpu_custom_call.1} parent=11 // pred_check
          %p147 = pneg %p64
        $region14: #{tpu_custom_call.1} parent=11 // pred_check_branch
          %149 = sbr.rel (%p147) target = $region16
        $region15: #{tpu_custom_call.1} parent=11 // pred_region
          %s151 = ssub.s32 2048, 2048
          %152 = vsyncadd [#allocation6], %s151
          %s153 = sshll.u32 [#allocation5], 4
          %s154 = int_to_ptr.vmem [resolvable:$true] %s153
          %159 = dma.hbm_to_vmem [thread:$0]  %s1, 2048, %s154, [#allocation6], 128, 128, 8
        $region16: #{tpu_custom_call.1} parent=11 // pred_fallthru
          _
        // Predicated region
        $region17: #{tpu_custom_call.1} parent=11 // pred_check
          %p160 = pneg %p85
        $region18: #{tpu_custom_call.1} parent=11 // pred_check_branch
          %162 = sbr.rel (%p160) target = $region20
        $region19: #{tpu_custom_call.1} parent=11 // pred_region
          _
        $region20: #{tpu_custom_call.1} parent=11 // pred_fallthru
          _
        // Predicated region
        $region21: #{tpu_custom_call.1} parent=11 // pred_check
          %p163 = pneg %p106
        $region22: #{tpu_custom_call.1} parent=11 // pred_check_branch
          %165 = sbr.rel (%p163) target = $region24
        $region23: #{tpu_custom_call.1} parent=11 // pred_region
          %s167 = ssub.s32 2048, 2048
          %168 = vsyncadd [#allocation6], %s167
          %s169 = sshll.u32 [#allocation7], 4
          %s170 = int_to_ptr.vmem [resolvable:$true] %s169
          %175 = dma.hbm_to_vmem [thread:$0]  %s3, 2048, %s170, [#allocation6], 64, 64, 4
        $region24: #{tpu_custom_call.1} parent=11 // pred_fallthru
          _
      $region12: #{tpu_custom_call.1} parent=5 // pred_fallthru
        _
      %p176 = scmp.lt.s32.totalorder %s17, 2
      // Predicated region
      $region25: #{tpu_custom_call.1} parent=5 // pred_check
        %p177 = pneg %p176
      $region26: #{tpu_custom_call.1} parent=5 // pred_check_branch
        %179 = sbr.rel (%p177) target = $region28
      $region27: #{tpu_custom_call.1} parent=5 // pred_region
        // Predicated region
        $region29: #{tpu_custom_call.1} parent=27 // pred_check
          %p180 = pneg %p37
        $region30: #{tpu_custom_call.1} parent=27 // pred_check_branch
          %182 = sbr.rel (%p180) target = $region32
        $region31: #{tpu_custom_call.1} parent=27 // pred_region
          %s183 = sand.u32 %s27, 1
          %s184 = scalar_lea.sflag [#allocation3], %s183
          %s185 = sand.u32 %s27, 1
          %s186 = smul.addr %s185, 64
          %s187 = scalar_lea.vmem [#allocation2], %s186
          %s188 = smul.u32 16, %s17
          %s190 = ssub.s32 1024, 1024
          %191 = vsyncadd %s184, %s190
          %s192 = smul.addr %s188, 64
          %s193 = scalar_lea.hbm %s0, %s192
          %s194 = sshll.u32 %s187, 4
          %s195 = int_to_ptr.vmem [resolvable:$true] %s194
          %200 = dma.hbm_to_vmem [thread:$0]  %s193, 1024, %s195, %s184, 64, 64, 4
        $region32: #{tpu_custom_call.1} parent=27 // pred_fallthru
          _
      $region28: #{tpu_custom_call.1} parent=5 // pred_fallthru
        _
      %p201 = scmp.le.s32.totalorder 1, %s17
      %p202 = scmp.lt.s32.totalorder %s17, 3
      %p203 = pnand %p201, %p202
      %p204 = pneg %p203
      // Predicated region
      $region33: #{tpu_custom_call.1} parent=5 // pred_check
        _
      $region34: #{tpu_custom_call.1} parent=5 // pred_check_branch
        %206 = sbr.rel (%p203) target = $region36
      $region35: #{tpu_custom_call.1} parent=5 // pred_region
        %s207 = ssub.s32 %s17, 1
        %s208 = sand.u32 %s30, 1
        %s209 = scalar_lea.sflag [#allocation3], %s208
        %s210 = sand.u32 %s30, 1
        %s211 = smul.addr %s210, 64
        %s212 = scalar_lea.vmem [#allocation2], %s211
        // Predicated region
        $region37: #{tpu_custom_call.1} parent=35 // pred_check
          %p213 = pneg %p43
        $region38: #{tpu_custom_call.1} parent=35 // pred_check_branch
          %215 = sbr.rel (%p213) target = $region40
        $region39: #{tpu_custom_call.1} parent=35 // pred_region
          %216 = dma.done %s209, 1024
        $region40: #{tpu_custom_call.1} parent=35 // pred_fallthru
          _
        // Predicated region
        $region41: #{tpu_custom_call.1} parent=35 // pred_check
          %p217 = pneg %p64
        $region42: #{tpu_custom_call.1} parent=35 // pred_check_branch
          %219 = sbr.rel (%p217) target = $region44
        $region43: #{tpu_custom_call.1} parent=35 // pred_region
          %220 = dma.done [#allocation6], 2048
        $region44: #{tpu_custom_call.1} parent=35 // pred_fallthru
          _
        // Predicated region
        $region45: #{tpu_custom_call.1} parent=35 // pred_check
          %p221 = pneg %p106
        $region46: #{tpu_custom_call.1} parent=35 // pred_check_branch
          %223 = sbr.rel (%p221) target = $region48
        $region47: #{tpu_custom_call.1} parent=35 // pred_region
          %224 = dma.done [#allocation6], 2048
        $region48: #{tpu_custom_call.1} parent=35 // pred_fallthru
          _
        %s225 = sand.u32 %s30, 1
        %s226 = scalar_lea.sflag [#allocation3], %s225
        %s227 = sand.u32 %s30, 1
        %s228 = smul.addr %s227, 64
        %s229 = scalar_lea.vmem [#allocation2], %s228
        %p230 = pneg %p43
        %p231 = pneg %p40
        %p232 = pneg %p64
        %p233 = pneg %p61
        %p234 = pneg %p85
        %p235 = pneg %p82
        %p236 = pneg %p106
        %p237 = pneg %p103
        %p238 = pneg %p132
        %p239 = pneg %p129
        %s240 = sand.u32 %s119, 1
        %s241 = scalar_lea.sflag [#allocation4], %s240
        %s242 = sand.u32 %s119, 1
        %s243 = smul.addr %s242, 64
        %s244 = scalar_lea.vmem [#allocation8], %s243
        %s245 = smul.u32 16, %s22
        %s246 = smul.u32 16, %s22
        %v248 = vld [vmem:[%s212] sm:$0xf]
        %v249 = vld [vmem:[%s212 + $0x4] sm:$0xf]
        %v250 = vld [vmem:[%s212 + $0x8] sm:$0xf]
        %v251 = vld [vmem:[%s212 + $0xc] sm:$0xf]
        %v252 = vld [vmem:[%s212 + $0x10] sm:$0xf]
        %v253 = vld [vmem:[%s212 + $0x14] sm:$0xf]
        %v254 = vld [vmem:[%s212 + $0x18] sm:$0xf]
        %v255 = vld [vmem:[%s212 + $0x1c] sm:$0xf]
        %v256 = vld [vmem:[%s212 + $0x20] sm:$0xf]
        %v257 = vld [vmem:[%s212 + $0x24] sm:$0xf]
        %v258 = vld [vmem:[%s212 + $0x28] sm:$0xf]
        %v259 = vld [vmem:[%s212 + $0x2c] sm:$0xf]
        %v260 = vld [vmem:[%s212 + $0x30] sm:$0xf]
        %v261 = vld [vmem:[%s212 + $0x34] sm:$0xf]
        %v262 = vld [vmem:[%s212 + $0x38] sm:$0xf]
        %v263 = vld [vmem:[%s212 + $0x3c] sm:$0xf]
        %v264 = vld [vmem:[#allocation5] sm:$0xff]
        %v265 = vld [vmem:[#allocation5 + $0x8] sm:$0xff]
        %v266 = vld [vmem:[#allocation5 + $0x10] sm:$0xff]
        %v267 = vld [vmem:[#allocation5 + $0x18] sm:$0xff]
        %v268 = vld [vmem:[#allocation5 + $0x20] sm:$0xff]
        %v269 = vld [vmem:[#allocation5 + $0x28] sm:$0xff]
        %v270 = vld [vmem:[#allocation5 + $0x30] sm:$0xff]
        %v271 = vld [vmem:[#allocation5 + $0x38] sm:$0xff]
        %v272 = vld [vmem:[#allocation5 + $0x40] sm:$0xff]
        %v273 = vld [vmem:[#allocation5 + $0x48] sm:$0xff]
        %v274 = vld [vmem:[#allocation5 + $0x50] sm:$0xff]
        %v275 = vld [vmem:[#allocation5 + $0x58] sm:$0xff]
        %v276 = vld [vmem:[#allocation5 + $0x60] sm:$0xff]
        %v277 = vld [vmem:[#allocation5 + $0x68] sm:$0xff]
        %v278 = vld [vmem:[#allocation5 + $0x70] sm:$0xff]
        %v279 = vld [vmem:[#allocation5 + $0x78] sm:$0xff]
        %v280 = vld [vmem:[%s2] sm:$0x3]
        %v282 = vlaneseq
        %v283 = vshrl.u32 %v282, 7
        %v284 = vsub.s32 0, %v283
        %v285 = vrot.slane %v280, %v284
        %v286 = vlaneseq
        %v287 = vshrl.u32 %v286, 7
        %v288 = vsub.s32 1, %v287
        %v289 = vrot.slane %v280, %v288
        %v308 = vunpack.c.l.b16 %v248
        %v309 = vunpack.c.l.b16 %v249
        %v310 = vunpack.c.l.b16 %v250
        %v311 = vunpack.c.l.b16 %v251
        %v312 = vunpack.c.l.b16 %v252
        %v313 = vunpack.c.l.b16 %v253
        %v314 = vunpack.c.l.b16 %v254
        %v315 = vunpack.c.l.b16 %v255
        %v316 = vunpack.c.l.b16 %v256
        %v317 = vunpack.c.l.b16 %v257
        %v318 = vunpack.c.l.b16 %v258
        %v319 = vunpack.c.l.b16 %v259
        %v320 = vunpack.c.l.b16 %v260
        %v321 = vunpack.c.l.b16 %v261
        %v322 = vunpack.c.l.b16 %v262
        %v323 = vunpack.c.l.b16 %v263
        %v324 = vpack.c.b16 %v309, %v308
        %v325 = vpack.c.b16 %v311, %v310
        %v326 = vpack.c.b16 %v313, %v312
        %v327 = vpack.c.b16 %v315, %v314
        %v328 = vpack.c.b16 %v317, %v316
        %v329 = vpack.c.b16 %v319, %v318
        %v330 = vpack.c.b16 %v321, %v320
        %v331 = vpack.c.b16 %v323, %v322
        %v356 = vunpack.c.l.b16 %v264
        %v357 = vunpack.c.h.b16 %v264
        %v358 = vunpack.c.l.b16 %v265
        %v359 = vunpack.c.h.b16 %v265
        %v360 = vunpack.c.l.b16 %v266
        %v361 = vunpack.c.h.b16 %v266
        %v362 = vunpack.c.l.b16 %v267
        %v363 = vunpack.c.h.b16 %v267
        %v364 = vunpack.c.l.b16 %v268
        %v365 = vunpack.c.h.b16 %v268
        %v366 = vunpack.c.l.b16 %v269
        %v367 = vunpack.c.h.b16 %v269
        %v368 = vunpack.c.l.b16 %v270
        %v369 = vunpack.c.h.b16 %v270
        %v370 = vunpack.c.l.b16 %v271
        %v371 = vunpack.c.h.b16 %v271
        %v372 = vunpack.c.l.b16 %v272
        %v373 = vunpack.c.h.b16 %v272
        %v374 = vunpack.c.l.b16 %v273
        %v375 = vunpack.c.h.b16 %v273
        %v376 = vunpack.c.l.b16 %v274
        %v377 = vunpack.c.h.b16 %v274
        %v378 = vunpack.c.l.b16 %v275
        %v379 = vunpack.c.h.b16 %v275
        %v380 = vunpack.c.l.b16 %v276
        %v381 = vunpack.c.h.b16 %v276
        %v382 = vunpack.c.l.b16 %v277
        %v383 = vunpack.c.h.b16 %v277
        %v384 = vunpack.c.l.b16 %v278
        %v385 = vunpack.c.h.b16 %v278
        %v386 = vunpack.c.l.b16 %v279
        %v387 = vunpack.c.h.b16 %v279
        %v388 = vpack.c.b16 %v358, %v356
        %v389 = vpack.c.b16 %v359, %v357
        %v390 = vpack.c.b16 %v362, %v360
        %v391 = vpack.c.b16 %v363, %v361
        %v392 = vpack.c.b16 %v366, %v364
        %v393 = vpack.c.b16 %v367, %v365
        %v394 = vpack.c.b16 %v370, %v368
        %v395 = vpack.c.b16 %v371, %v369
        %v396 = vpack.c.b16 %v374, %v372
        %v397 = vpack.c.b16 %v375, %v373
        %v398 = vpack.c.b16 %v378, %v376
        %v399 = vpack.c.b16 %v379, %v377
        %v400 = vpack.c.b16 %v382, %v380
        %v401 = vpack.c.b16 %v383, %v381
        %v402 = vpack.c.b16 %v386, %v384
        %v403 = vpack.c.b16 %v387, %v385
        %420 = vmatprep.subr.bf16.mxu0 %v389
        %421 = vmatpush1.bf16.msra.mxu0 %v388
        %422 = vmatprep.subr.bf16.mxu0 %v391
        %423 = vmatpush1.bf16.msra.mxu0 %v390
        %424 = vmatprep.subr.bf16.mxu0 %v393
        %425 = vmatpush1.bf16.msra.mxu0 %v392
        %426 = vmatprep.subr.bf16.mxu0 %v395
        %427 = vmatpush1.bf16.msra.mxu0 %v394
        %428 = vmatprep.subr.bf16.mxu0 %v397
        %429 = vmatpush1.bf16.msra.mxu0 %v396
        %430 = vmatprep.subr.bf16.mxu0 %v399
        %431 = vmatpush1.bf16.msra.mxu0 %v398
        %432 = vmatprep.subr.bf16.mxu0 %v401
        %433 = vmatpush1.bf16.msra.mxu0 %v400
        %434 = vmatprep.subr.bf16.mxu0 %v403
        %435 = vmatpush1.bf16.msra.mxu0 %v402
        %436 = vmatprep.subr.bf16.mxu0 0
        %437 = vmatpush1.bf16.msra.mxu0 0
        %438 = vmatprep.subr.bf16.mxu0 0
        %439 = vmatpush1.bf16.msra.mxu0 0
        %440 = vmatprep.subr.bf16.mxu0 0
        %441 = vmatpush1.bf16.msra.mxu0 0
        %442 = vmatprep.subr.bf16.mxu0 0
        %443 = vmatpush1.bf16.msra.mxu0 0
        %444 = vmatprep.subr.bf16.mxu0 0
        %445 = vmatpush1.bf16.msra.mxu0 0
        %446 = vmatprep.subr.bf16.mxu0 0
        %447 = vmatpush1.bf16.msra.mxu0 0
        %448 = vmatprep.subr.bf16.mxu0 0
        %449 = vmatpush1.bf16.msra.mxu0 0
        %450 = vmatprep.subr.bf16.mxu0 0
        %451 = vmatpush1.bf16.msra.mxu0 0
        %452 = vmatprep.mubr.bf16.mxu0 0
        %453 = vmatmul.mubr.bf16.gmra.mrb[0].mxu0 %v324
        %v454 = vpop.f32.mrb[0].mxu0
        %v455 = vadd.f32 %v285, %v454
        %v456 = vpop.f32.mrb[0].mxu0
        %v457 = vadd.f32 %v289, %v456
        %v458 = vpop.f32.mrb[0].mxu0
        %v459 = vadd.f32 %v285, %v458
        %v460 = vpop.f32.mrb[0].mxu0
        %v461 = vadd.f32 %v289, %v460
        %462 = vmatprep.mubr.bf16.mxu0 0
        %463 = vmatmul.mubr.bf16.gmra.mrb[0].mxu0 %v325
        %v464 = vpop.f32.mrb[0].mxu0
        %v465 = vadd.f32 %v285, %v464
        %v466 = vpop.f32.mrb[0].mxu0
        %v467 = vadd.f32 %v289, %v466
        %v468 = vpop.f32.mrb[0].mxu0
        %v469 = vadd.f32 %v285, %v468
        %v470 = vpop.f32.mrb[0].mxu0
        %v471 = vadd.f32 %v289, %v470
        %472 = vmatprep.mubr.bf16.mxu0 0
        %473 = vmatmul.mubr.bf16.gmra.mrb[0].mxu0 %v326
        %v474 = vpop.f32.mrb[0].mxu0
        %v475 = vadd.f32 %v285, %v474
        %v476 = vpop.f32.mrb[0].mxu0
        %v477 = vadd.f32 %v289, %v476
        %v478 = vpop.f32.mrb[0].mxu0
        %v479 = vadd.f32 %v285, %v478
        %v480 = vpop.f32.mrb[0].mxu0
        %v481 = vadd.f32 %v289, %v480
        %482 = vmatprep.mubr.bf16.mxu0 0
        %483 = vmatmul.mubr.bf16.gmra.mrb[0].mxu0 %v327
        %v484 = vpop.f32.mrb[0].mxu0
        %v485 = vadd.f32 %v285, %v484
        %v486 = vpop.f32.mrb[0].mxu0
        %v487 = vadd.f32 %v289, %v486
        %v488 = vpop.f32.mrb[0].mxu0
        %v489 = vadd.f32 %v285, %v488
        %v490 = vpop.f32.mrb[0].mxu0
        %v491 = vadd.f32 %v289, %v490
        %492 = vmatprep.mubr.bf16.mxu0 0
        %493 = vmatmul.mubr.bf16.gmra.mrb[0].mxu0 %v328
        %v494 = vpop.f32.mrb[0].mxu0
        %v495 = vadd.f32 %v285, %v494
        %v496 = vpop.f32.mrb[0].mxu0
        %v497 = vadd.f32 %v289, %v496
        %v498 = vpop.f32.mrb[0].mxu0
        %v499 = vadd.f32 %v285, %v498
        %v500 = vpop.f32.mrb[0].mxu0
        %v501 = vadd.f32 %v289, %v500
        %502 = vmatprep.mubr.bf16.mxu0 0
        %503 = vmatmul.mubr.bf16.gmra.mrb[0].mxu0 %v329
        %v504 = vpop.f32.mrb[0].mxu0
        %v505 = vadd.f32 %v285, %v504
        %v506 = vpop.f32.mrb[0].mxu0
        %v507 = vadd.f32 %v289, %v506
        %v508 = vpop.f32.mrb[0].mxu0
        %v509 = vadd.f32 %v285, %v508
        %v510 = vpop.f32.mrb[0].mxu0
        %v511 = vadd.f32 %v289, %v510
        %512 = vmatprep.mubr.bf16.mxu0 0
        %513 = vmatmul.mubr.bf16.gmra.mrb[0].mxu0 %v330
        %v514 = vpop.f32.mrb[0].mxu0
        %v515 = vadd.f32 %v285, %v514
        %v516 = vpop.f32.mrb[0].mxu0
        %v517 = vadd.f32 %v289, %v516
        %v518 = vpop.f32.mrb[0].mxu0
        %v519 = vadd.f32 %v285, %v518
        %v520 = vpop.f32.mrb[0].mxu0
        %v521 = vadd.f32 %v289, %v520
        %522 = vmatprep.mubr.bf16.mxu0 0
        %523 = vmatmul.mubr.bf16.gmra.mrb[0].mxu0 %v331
        %v524 = vpop.f32.mrb[0].mxu0
        %v525 = vadd.f32 %v285, %v524
        %v526 = vpop.f32.mrb[0].mxu0
        %v527 = vadd.f32 %v289, %v526
        %v528 = vpop.f32.mrb[0].mxu0
        %v529 = vadd.f32 %v285, %v528
        %v530 = vpop.f32.mrb[0].mxu0
        %v531 = vadd.f32 %v289, %v530
        %532 = vdwg.mxu0
        %vm533 = vcmp.gt.f32.partialorder %v455, 0.0
        %vm534 = vcmp.gt.f32.partialorder %v457, 0.0
        %vm535 = vcmp.gt.f32.partialorder %v459, 0.0
        %vm536 = vcmp.gt.f32.partialorder %v461, 0.0
        %vm537 = vcmp.gt.f32.partialorder %v465, 0.0
        %vm538 = vcmp.gt.f32.partialorder %v467, 0.0
        %vm539 = vcmp.gt.f32.partialorder %v469, 0.0
        %vm540 = vcmp.gt.f32.partialorder %v471, 0.0
        %vm541 = vcmp.gt.f32.partialorder %v475, 0.0
        %vm542 = vcmp.gt.f32.partialorder %v477, 0.0
        %vm543 = vcmp.gt.f32.partialorder %v479, 0.0
        %vm544 = vcmp.gt.f32.partialorder %v481, 0.0
        %vm545 = vcmp.gt.f32.partialorder %v485, 0.0
        %vm546 = vcmp.gt.f32.partialorder %v487, 0.0
        %vm547 = vcmp.gt.f32.partialorder %v489, 0.0
        %vm548 = vcmp.gt.f32.partialorder %v491, 0.0
        %vm549 = vcmp.gt.f32.partialorder %v495, 0.0
        %vm550 = vcmp.gt.f32.partialorder %v497, 0.0
        %vm551 = vcmp.gt.f32.partialorder %v499, 0.0
        %vm552 = vcmp.gt.f32.partialorder %v501, 0.0
        %vm553 = vcmp.gt.f32.partialorder %v505, 0.0
        %vm554 = vcmp.gt.f32.partialorder %v507, 0.0
        %vm555 = vcmp.gt.f32.partialorder %v509, 0.0
        %vm556 = vcmp.gt.f32.partialorder %v511, 0.0
        %vm557 = vcmp.gt.f32.partialorder %v515, 0.0
        %vm558 = vcmp.gt.f32.partialorder %v517, 0.0
        %vm559 = vcmp.gt.f32.partialorder %v519, 0.0
        %vm560 = vcmp.gt.f32.partialorder %v521, 0.0
        %vm561 = vcmp.gt.f32.partialorder %v525, 0.0
        %vm562 = vcmp.gt.f32.partialorder %v527, 0.0
        %vm563 = vcmp.gt.f32.partialorder %v529, 0.0
        %vm564 = vcmp.gt.f32.partialorder %v531, 0.0
        %v565 = vmul.f32 %v455, 1.442695
        %v566 = vpow.pop %v565
        %v567 = vmul.f32 %v457, 1.442695
        %v568 = vpow.pop %v567
        %v569 = vmul.f32 %v459, 1.442695
        %v570 = vpow.pop %v569
        %v571 = vmul.f32 %v461, 1.442695
        %v572 = vpow.pop %v571
        %v573 = vmul.f32 %v465, 1.442695
        %v574 = vpow.pop %v573
        %v575 = vmul.f32 %v467, 1.442695
        %v576 = vpow.pop %v575
        %v577 = vmul.f32 %v469, 1.442695
        %v578 = vpow.pop %v577
        %v579 = vmul.f32 %v471, 1.442695
        %v580 = vpow.pop %v579
        %v581 = vmul.f32 %v475, 1.442695
        %v582 = vpow.pop %v581
        %v583 = vmul.f32 %v477, 1.442695
        %v584 = vpow.pop %v583
        %v585 = vmul.f32 %v479, 1.442695
        %v586 = vpow.pop %v585
        %v587 = vmul.f32 %v481, 1.442695
        %v588 = vpow.pop %v587
        %v589 = vmul.f32 %v485, 1.442695
        %v590 = vpow.pop %v589
        %v591 = vmul.f32 %v487, 1.442695
        %v592 = vpow.pop %v591
        %v593 = vmul.f32 %v489, 1.442695
        %v594 = vpow.pop %v593
        %v595 = vmul.f32 %v491, 1.442695
        %v596 = vpow.pop %v595
        %v597 = vmul.f32 %v495, 1.442695
        %v598 = vpow.pop %v597
        %v599 = vmul.f32 %v497, 1.442695
        %v600 = vpow.pop %v599
        %v601 = vmul.f32 %v499, 1.442695
        %v602 = vpow.pop %v601
        %v603 = vmul.f32 %v501, 1.442695
        %v604 = vpow.pop %v603
        %v605 = vmul.f32 %v505, 1.442695
        %v606 = vpow.pop %v605
        %v607 = vmul.f32 %v507, 1.442695
        %v608 = vpow.pop %v607
        %v609 = vmul.f32 %v509, 1.442695
        %v610 = vpow.pop %v609
        %v611 = vmul.f32 %v511, 1.442695
        %v612 = vpow.pop %v611
        %v613 = vmul.f32 %v515, 1.442695
        %v614 = vpow.pop %v613
        %v615 = vmul.f32 %v517, 1.442695
        %v616 = vpow.pop %v615
        %v617 = vmul.f32 %v519, 1.442695
        %v618 = vpow.pop %v617
        %v619 = vmul.f32 %v521, 1.442695
        %v620 = vpow.pop %v619
        %v621 = vmul.f32 %v525, 1.442695
        %v622 = vpow.pop %v621
        %v623 = vmul.f32 %v527, 1.442695
        %v624 = vpow.pop %v623
        %v625 = vmul.f32 %v529, 1.442695
        %v626 = vpow.pop %v625
        %v627 = vmul.f32 %v531, 1.442695
        %v628 = vpow.pop %v627
        %v629 = vsub.f32 %v566, 1.0
        %v630 = vsub.f32 %v568, 1.0
        %v631 = vsub.f32 %v570, 1.0
        %v632 = vsub.f32 %v572, 1.0
        %v633 = vsub.f32 %v574, 1.0
        %v634 = vsub.f32 %v576, 1.0
        %v635 = vsub.f32 %v578, 1.0
        %v636 = vsub.f32 %v580, 1.0
        %v637 = vsub.f32 %v582, 1.0
        %v638 = vsub.f32 %v584, 1.0
        %v639 = vsub.f32 %v586, 1.0
        %v640 = vsub.f32 %v588, 1.0
        %v641 = vsub.f32 %v590, 1.0
        %v642 = vsub.f32 %v592, 1.0
        %v643 = vsub.f32 %v594, 1.0
        %v644 = vsub.f32 %v596, 1.0
        %v645 = vsub.f32 %v598, 1.0
        %v646 = vsub.f32 %v600, 1.0
        %v647 = vsub.f32 %v602, 1.0
        %v648 = vsub.f32 %v604, 1.0
        %v649 = vsub.f32 %v606, 1.0
        %v650 = vsub.f32 %v608, 1.0
        %v651 = vsub.f32 %v610, 1.0
        %v652 = vsub.f32 %v612, 1.0
        %v653 = vsub.f32 %v614, 1.0
        %v654 = vsub.f32 %v616, 1.0
        %v655 = vsub.f32 %v618, 1.0
        %v656 = vsub.f32 %v620, 1.0
        %v657 = vsub.f32 %v622, 1.0
        %v658 = vsub.f32 %v624, 1.0
        %v659 = vsub.f32 %v626, 1.0
        %v660 = vsub.f32 %v628, 1.0
        %v661 = vmul.f32 %v629, 1.6732632
        %v662 = vmul.f32 %v630, 1.6732632
        %v663 = vmul.f32 %v631, 1.6732632
        %v664 = vmul.f32 %v632, 1.6732632
        %v665 = vmul.f32 %v633, 1.6732632
        %v666 = vmul.f32 %v634, 1.6732632
        %v667 = vmul.f32 %v635, 1.6732632
        %v668 = vmul.f32 %v636, 1.6732632
        %v669 = vmul.f32 %v637, 1.6732632
        %v670 = vmul.f32 %v638, 1.6732632
        %v671 = vmul.f32 %v639, 1.6732632
        %v672 = vmul.f32 %v640, 1.6732632
        %v673 = vmul.f32 %v641, 1.6732632
        %v674 = vmul.f32 %v642, 1.6732632
        %v675 = vmul.f32 %v643, 1.6732632
        %v676 = vmul.f32 %v644, 1.6732632
        %v677 = vmul.f32 %v645, 1.6732632
        %v678 = vmul.f32 %v646, 1.6732632
        %v679 = vmul.f32 %v647, 1.6732632
        %v680 = vmul.f32 %v648, 1.6732632
        %v681 = vmul.f32 %v649, 1.6732632
        %v682 = vmul.f32 %v650, 1.6732632
        %v683 = vmul.f32 %v651, 1.6732632
        %v684 = vmul.f32 %v652, 1.6732632
        %v685 = vmul.f32 %v653, 1.6732632
        %v686 = vmul.f32 %v654, 1.6732632
        %v687 = vmul.f32 %v655, 1.6732632
        %v688 = vmul.f32 %v656, 1.6732632
        %v689 = vmul.f32 %v657, 1.6732632
        %v690 = vmul.f32 %v658, 1.6732632
        %v691 = vmul.f32 %v659, 1.6732632
        %v692 = vmul.f32 %v660, 1.6732632
        %v693 = vsel %vm533, %v455, %v661
        %v694 = vsel %vm534, %v457, %v662
        %v695 = vsel %vm535, %v459, %v663
        %v696 = vsel %vm536, %v461, %v664
        %v697 = vsel %vm537, %v465, %v665
        %v698 = vsel %vm538, %v467, %v666
        %v699 = vsel %vm539, %v469, %v667
        %v700 = vsel %vm540, %v471, %v668
        %v701 = vsel %vm541, %v475, %v669
        %v702 = vsel %vm542, %v477, %v670
        %v703 = vsel %vm543, %v479, %v671
        %v704 = vsel %vm544, %v481, %v672
        %v705 = vsel %vm545, %v485, %v673
        %v706 = vsel %vm546, %v487, %v674
        %v707 = vsel %vm547, %v489, %v675
        %v708 = vsel %vm548, %v491, %v676
        %v709 = vsel %vm549, %v495, %v677
        %v710 = vsel %vm550, %v497, %v678
        %v711 = vsel %vm551, %v499, %v679
        %v712 = vsel %vm552, %v501, %v680
        %v713 = vsel %vm553, %v505, %v681
        %v714 = vsel %vm554, %v507, %v682
        %v715 = vsel %vm555, %v509, %v683
        %v716 = vsel %vm556, %v511, %v684
        %v717 = vsel %vm557, %v515, %v685
        %v718 = vsel %vm558, %v517, %v686
        %v719 = vsel %vm559, %v519, %v687
        %v720 = vsel %vm560, %v521, %v688
        %v721 = vsel %vm561, %v525, %v689
        %v722 = vsel %vm562, %v527, %v690
        %v723 = vsel %vm563, %v529, %v691
        %v724 = vsel %vm564, %v531, %v692
        %v725 = vmul.f32 %v693, 1.050701
        %v726 = vmul.f32 %v694, 1.050701
        %v727 = vmul.f32 %v695, 1.050701
        %v728 = vmul.f32 %v696, 1.050701
        %v729 = vmul.f32 %v697, 1.050701
        %v730 = vmul.f32 %v698, 1.050701
        %v731 = vmul.f32 %v699, 1.050701
        %v732 = vmul.f32 %v700, 1.050701
        %v733 = vmul.f32 %v701, 1.050701
        %v734 = vmul.f32 %v702, 1.050701
        %v735 = vmul.f32 %v703, 1.050701
        %v736 = vmul.f32 %v704, 1.050701
        %v737 = vmul.f32 %v705, 1.050701
        %v738 = vmul.f32 %v706, 1.050701
        %v739 = vmul.f32 %v707, 1.050701
        %v740 = vmul.f32 %v708, 1.050701
        %v741 = vmul.f32 %v709, 1.050701
        %v742 = vmul.f32 %v710, 1.050701
        %v743 = vmul.f32 %v711, 1.050701
        %v744 = vmul.f32 %v712, 1.050701
        %v745 = vmul.f32 %v713, 1.050701
        %v746 = vmul.f32 %v714, 1.050701
        %v747 = vmul.f32 %v715, 1.050701
        %v748 = vmul.f32 %v716, 1.050701
        %v749 = vmul.f32 %v717, 1.050701
        %v750 = vmul.f32 %v718, 1.050701
        %v751 = vmul.f32 %v719, 1.050701
        %v752 = vmul.f32 %v720, 1.050701
        %v753 = vmul.f32 %v721, 1.050701
        %v754 = vmul.f32 %v722, 1.050701
        %v755 = vmul.f32 %v723, 1.050701
        %v756 = vmul.f32 %v724, 1.050701
        %v757 = vpack.c.bf16 %v727, %v725
        %v758 = vpack.c.bf16 %v728, %v726
        %v759 = vpack.c.bf16 %v731, %v729
        %v760 = vpack.c.bf16 %v732, %v730
        %v761 = vpack.c.bf16 %v735, %v733
        %v762 = vpack.c.bf16 %v736, %v734
        %v763 = vpack.c.bf16 %v739, %v737
        %v764 = vpack.c.bf16 %v740, %v738
        %v765 = vpack.c.bf16 %v743, %v741
        %v766 = vpack.c.bf16 %v744, %v742
        %v767 = vpack.c.bf16 %v747, %v745
        %v768 = vpack.c.bf16 %v748, %v746
        %v769 = vpack.c.bf16 %v751, %v749
        %v770 = vpack.c.bf16 %v752, %v750
        %v771 = vpack.c.bf16 %v755, %v753
        %v772 = vpack.c.bf16 %v756, %v754
        %v773 = vld [vmem:[#allocation7] sm:$0xf]
        %v774 = vld [vmem:[#allocation7 + $0x4] sm:$0xf]
        %v775 = vld [vmem:[#allocation7 + $0x8] sm:$0xf]
        %v776 = vld [vmem:[#allocation7 + $0xc] sm:$0xf]
        %v777 = vld [vmem:[#allocation7 + $0x10] sm:$0xf]
        %v778 = vld [vmem:[#allocation7 + $0x14] sm:$0xf]
        %v779 = vld [vmem:[#allocation7 + $0x18] sm:$0xf]
        %v780 = vld [vmem:[#allocation7 + $0x1c] sm:$0xf]
        %v781 = vld [vmem:[#allocation7 + $0x20] sm:$0xf]
        %v782 = vld [vmem:[#allocation7 + $0x24] sm:$0xf]
        %v783 = vld [vmem:[#allocation7 + $0x28] sm:$0xf]
        %v784 = vld [vmem:[#allocation7 + $0x2c] sm:$0xf]
        %v785 = vld [vmem:[#allocation7 + $0x30] sm:$0xf]
        %v786 = vld [vmem:[#allocation7 + $0x34] sm:$0xf]
        %v787 = vld [vmem:[#allocation7 + $0x38] sm:$0xf]
        %v788 = vld [vmem:[#allocation7 + $0x3c] sm:$0xf]
        %v789 = vld [vmem:[#allocation7 + $0x40] sm:$0xf]
        %v790 = vld [vmem:[#allocation7 + $0x44] sm:$0xf]
        %v791 = vld [vmem:[#allocation7 + $0x48] sm:$0xf]
        %v792 = vld [vmem:[#allocation7 + $0x4c] sm:$0xf]
        %v793 = vld [vmem:[#allocation7 + $0x50] sm:$0xf]
        %v794 = vld [vmem:[#allocation7 + $0x54] sm:$0xf]
        %v795 = vld [vmem:[#allocation7 + $0x58] sm:$0xf]
        %v796 = vld [vmem:[#allocation7 + $0x5c] sm:$0xf]
        %v797 = vld [vmem:[#allocation7 + $0x60] sm:$0xf]
        %v798 = vld [vmem:[#allocation7 + $0x64] sm:$0xf]
        %v799 = vld [vmem:[#allocation7 + $0x68] sm:$0xf]
        %v800 = vld [vmem:[#allocation7 + $0x6c] sm:$0xf]
        %v801 = vld [vmem:[#allocation7 + $0x70] sm:$0xf]
        %v802 = vld [vmem:[#allocation7 + $0x74] sm:$0xf]
        %v803 = vld [vmem:[#allocation7 + $0x78] sm:$0xf]
        %v804 = vld [vmem:[#allocation7 + $0x7c] sm:$0xf]
        %v837 = vunpack.c.l.b16 %v773
        %v838 = vunpack.c.l.b16 %v774
        %v839 = vunpack.c.l.b16 %v775
        %v840 = vunpack.c.l.b16 %v776
        %v841 = vunpack.c.l.b16 %v777
        %v842 = vunpack.c.l.b16 %v778
        %v843 = vunpack.c.l.b16 %v779
        %v844 = vunpack.c.l.b16 %v780
        %v845 = vunpack.c.l.b16 %v781
        %v846 = vunpack.c.l.b16 %v782
        %v847 = vunpack.c.l.b16 %v783
        %v848 = vunpack.c.l.b16 %v784
        %v849 = vunpack.c.l.b16 %v785
        %v850 = vunpack.c.l.b16 %v786
        %v851 = vunpack.c.l.b16 %v787
        %v852 = vunpack.c.l.b16 %v788
        %v853 = vunpack.c.l.b16 %v789
        %v854 = vunpack.c.l.b16 %v790
        %v855 = vunpack.c.l.b16 %v791
        %v856 = vunpack.c.l.b16 %v792
        %v857 = vunpack.c.l.b16 %v793
        %v858 = vunpack.c.l.b16 %v794
        %v859 = vunpack.c.l.b16 %v795
        %v860 = vunpack.c.l.b16 %v796
        %v861 = vunpack.c.l.b16 %v797
        %v862 = vunpack.c.l.b16 %v798
        %v863 = vunpack.c.l.b16 %v799
        %v864 = vunpack.c.l.b16 %v800
        %v865 = vunpack.c.l.b16 %v801
        %v866 = vunpack.c.l.b16 %v802
        %v867 = vunpack.c.l.b16 %v803
        %v868 = vunpack.c.l.b16 %v804
        %v869 = vpack.c.b16 %v838, %v837
        %v870 = vpack.c.b16 %v840, %v839
        %v871 = vpack.c.b16 %v842, %v841
        %v872 = vpack.c.b16 %v844, %v843
        %v873 = vpack.c.b16 %v846, %v845
        %v874 = vpack.c.b16 %v848, %v847
        %v875 = vpack.c.b16 %v850, %v849
        %v876 = vpack.c.b16 %v852, %v851
        %v877 = vpack.c.b16 %v854, %v853
        %v878 = vpack.c.b16 %v856, %v855
        %v879 = vpack.c.b16 %v858, %v857
        %v880 = vpack.c.b16 %v860, %v859
        %v881 = vpack.c.b16 %v862, %v861
        %v882 = vpack.c.b16 %v864, %v863
        %v883 = vpack.c.b16 %v866, %v865
        %v884 = vpack.c.b16 %v868, %v867
        %901 = vmatprep.subr.bf16.mxu0 0
        %902 = vmatpush1.bf16.msra.mxu0 %v869
        %903 = vmatprep.subr.bf16.mxu0 0
        %904 = vmatpush1.bf16.msra.mxu0 %v870
        %905 = vmatprep.subr.bf16.mxu0 0
        %906 = vmatpush1.bf16.msra.mxu0 %v871
        %907 = vmatprep.subr.bf16.mxu0 0
        %908 = vmatpush1.bf16.msra.mxu0 %v872
        %909 = vmatprep.subr.bf16.mxu0 0
        %910 = vmatpush1.bf16.msra.mxu0 %v873
        %911 = vmatprep.subr.bf16.mxu0 0
        %912 = vmatpush1.bf16.msra.mxu0 %v874
        %913 = vmatprep.subr.bf16.mxu0 0
        %914 = vmatpush1.bf16.msra.mxu0 %v875
        %915 = vmatprep.subr.bf16.mxu0 0
        %916 = vmatpush1.bf16.msra.mxu0 %v876
        %917 = vmatprep.subr.bf16.mxu0 0
        %918 = vmatpush1.bf16.msra.mxu0 %v877
        %919 = vmatprep.subr.bf16.mxu0 0
        %920 = vmatpush1.bf16.msra.mxu0 %v878
        %921 = vmatprep.subr.bf16.mxu0 0
        %922 = vmatpush1.bf16.msra.mxu0 %v879
        %923 = vmatprep.subr.bf16.mxu0 0
        %924 = vmatpush1.bf16.msra.mxu0 %v880
        %925 = vmatprep.subr.bf16.mxu0 0
        %926 = vmatpush1.bf16.msra.mxu0 %v881
        %927 = vmatprep.subr.bf16.mxu0 0
        %928 = vmatpush1.bf16.msra.mxu0 %v882
        %929 = vmatprep.subr.bf16.mxu0 0
        %930 = vmatpush1.bf16.msra.mxu0 %v883
        %931 = vmatprep.subr.bf16.mxu0 0
        %932 = vmatpush1.bf16.msra.mxu0 %v884
        %933 = vmatprep.mubr.bf16.mxu0 %v758
        %934 = vmatmul.mubr.bf16.gmra.mrb[0].mxu0 %v757
        %v935 = vpop.f32.mrb[0].mxu0
        %v936 = vadd.f32 0.0, %v935
        %v937 = vpop.f32.mrb[0].mxu0
        %v938 = vpop.f32.mrb[0].mxu0
        %v939 = vadd.f32 0.0, %v938
        %v940 = vpop.f32.mrb[0].mxu0
        %941 = vmatprep.mubr.bf16.mxu0 %v760
        %942 = vmatmul.mubr.bf16.gmra.mrb[0].mxu0 %v759
        %v943 = vpop.f32.mrb[0].mxu0
        %v944 = vadd.f32 0.0, %v943
        %v945 = vpop.f32.mrb[0].mxu0
        %v946 = vpop.f32.mrb[0].mxu0
        %v947 = vadd.f32 0.0, %v946
        %v948 = vpop.f32.mrb[0].mxu0
        %949 = vmatprep.mubr.bf16.mxu0 %v762
        %950 = vmatmul.mubr.bf16.gmra.mrb[0].mxu0 %v761
        %v951 = vpop.f32.mrb[0].mxu0
        %v952 = vadd.f32 0.0, %v951
        %v953 = vpop.f32.mrb[0].mxu0
        %v954 = vpop.f32.mrb[0].mxu0
        %v955 = vadd.f32 0.0, %v954
        %v956 = vpop.f32.mrb[0].mxu0
        %957 = vmatprep.mubr.bf16.mxu0 %v764
        %958 = vmatmul.mubr.bf16.gmra.mrb[0].mxu0 %v763
        %v959 = vpop.f32.mrb[0].mxu0
        %v960 = vadd.f32 0.0, %v959
        %v961 = vpop.f32.mrb[0].mxu0
        %v962 = vpop.f32.mrb[0].mxu0
        %v963 = vadd.f32 0.0, %v962
        %v964 = vpop.f32.mrb[0].mxu0
        %965 = vmatprep.mubr.bf16.mxu0 %v766
        %966 = vmatmul.mubr.bf16.gmra.mrb[0].mxu0 %v765
        %v967 = vpop.f32.mrb[0].mxu0
        %v968 = vadd.f32 0.0, %v967
        %v969 = vpop.f32.mrb[0].mxu0
        %v970 = vpop.f32.mrb[0].mxu0
        %v971 = vadd.f32 0.0, %v970
        %v972 = vpop.f32.mrb[0].mxu0
        %973 = vmatprep.mubr.bf16.mxu0 %v768
        %974 = vmatmul.mubr.bf16.gmra.mrb[0].mxu0 %v767
        %v975 = vpop.f32.mrb[0].mxu0
        %v976 = vadd.f32 0.0, %v975
        %v977 = vpop.f32.mrb[0].mxu0
        %v978 = vpop.f32.mrb[0].mxu0
        %v979 = vadd.f32 0.0, %v978
        %v980 = vpop.f32.mrb[0].mxu0
        %981 = vmatprep.mubr.bf16.mxu0 %v770
        %982 = vmatmul.mubr.bf16.gmra.mrb[0].mxu0 %v769
        %v983 = vpop.f32.mrb[0].mxu0
        %v984 = vadd.f32 0.0, %v983
        %v985 = vpop.f32.mrb[0].mxu0
        %v986 = vpop.f32.mrb[0].mxu0
        %v987 = vadd.f32 0.0, %v986
        %v988 = vpop.f32.mrb[0].mxu0
        %989 = vmatprep.mubr.bf16.mxu0 %v772
        %990 = vmatmul.mubr.bf16.gmra.mrb[0].mxu0 %v771
        %v991 = vpop.f32.mrb[0].mxu0
        %v992 = vadd.f32 0.0, %v991
        %v993 = vpop.f32.mrb[0].mxu0
        %v994 = vpop.f32.mrb[0].mxu0
        %v995 = vadd.f32 0.0, %v994
        %v996 = vpop.f32.mrb[0].mxu0
        %997 = vdwg.mxu0
        %v998 = vpack.c.bf16 %v939, %v936
        %v999 = vpack.c.bf16 %v947, %v944
        %v1000 = vpack.c.bf16 %v955, %v952
        %v1001 = vpack.c.bf16 %v963, %v960
        %v1002 = vpack.c.bf16 %v971, %v968
        %v1003 = vpack.c.bf16 %v979, %v976
        %v1004 = vpack.c.bf16 %v987, %v984
        %v1005 = vpack.c.bf16 %v995, %v992
        %v1014 = vunpack.c.l.b16 %v998
        %v1015 = vunpack.c.h.b16 %v998
        %v1016 = vunpack.c.l.b16 %v999
        %v1017 = vunpack.c.h.b16 %v999
        %v1018 = vunpack.c.l.b16 %v1000
        %v1019 = vunpack.c.h.b16 %v1000
        %v1020 = vunpack.c.l.b16 %v1001
        %v1021 = vunpack.c.h.b16 %v1001
        %v1022 = vunpack.c.l.b16 %v1002
        %v1023 = vunpack.c.h.b16 %v1002
        %v1024 = vunpack.c.l.b16 %v1003
        %v1025 = vunpack.c.h.b16 %v1003
        %v1026 = vunpack.c.l.b16 %v1004
        %v1027 = vunpack.c.h.b16 %v1004
        %v1028 = vunpack.c.l.b16 %v1005
        %v1029 = vunpack.c.h.b16 %v1005
        %v1030 = vpack.c.b16 %v1014, %v1014
        %v1031 = vpack.c.b16 %v1015, %v1015
        %v1032 = vpack.c.b16 %v1016, %v1016
        %v1033 = vpack.c.b16 %v1017, %v1017
        %v1034 = vpack.c.b16 %v1018, %v1018
        %v1035 = vpack.c.b16 %v1019, %v1019
        %v1036 = vpack.c.b16 %v1020, %v1020
        %v1037 = vpack.c.b16 %v1021, %v1021
        %v1038 = vpack.c.b16 %v1022, %v1022
        %v1039 = vpack.c.b16 %v1023, %v1023
        %v1040 = vpack.c.b16 %v1024, %v1024
        %v1041 = vpack.c.b16 %v1025, %v1025
        %v1042 = vpack.c.b16 %v1026, %v1026
        %v1043 = vpack.c.b16 %v1027, %v1027
        %v1044 = vpack.c.b16 %v1028, %v1028
        %v1045 = vpack.c.b16 %v1029, %v1029
        %1062 = vst [vmem:[%s244] sm:$0xf] %v1030
        %1063 = vst [vmem:[%s244 + $0x4] sm:$0xf] %v1031
        %1064 = vst [vmem:[%s244 + $0x8] sm:$0xf] %v1032
        %1065 = vst [vmem:[%s244 + $0xc] sm:$0xf] %v1033
        %1066 = vst [vmem:[%s244 + $0x10] sm:$0xf] %v1034
        %1067 = vst [vmem:[%s244 + $0x14] sm:$0xf] %v1035
        %1068 = vst [vmem:[%s244 + $0x18] sm:$0xf] %v1036
        %1069 = vst [vmem:[%s244 + $0x1c] sm:$0xf] %v1037
        %1070 = vst [vmem:[%s244 + $0x20] sm:$0xf] %v1038
        %1071 = vst [vmem:[%s244 + $0x24] sm:$0xf] %v1039
        %1072 = vst [vmem:[%s244 + $0x28] sm:$0xf] %v1040
        %1073 = vst [vmem:[%s244 + $0x2c] sm:$0xf] %v1041
        %1074 = vst [vmem:[%s244 + $0x30] sm:$0xf] %v1042
        %1075 = vst [vmem:[%s244 + $0x34] sm:$0xf] %v1043
        %1076 = vst [vmem:[%s244 + $0x38] sm:$0xf] %v1044
        %1077 = vst [vmem:[%s244 + $0x3c] sm:$0xf] %v1045
        %s1078 = sand.u32 %s119, 1
        %s1079 = scalar_lea.sflag [#allocation4], %s1078
        %s1080 = sand.u32 %s119, 1
        %s1081 = smul.addr %s1080, 64
        %s1082 = scalar_lea.vmem [#allocation8], %s1081
        // Predicated region
        $region49: #{tpu_custom_call.1} parent=35 // pred_check
          %p1083 = pneg %p129
        $region50: #{tpu_custom_call.1} parent=35 // pred_check_branch
          %1085 = sbr.rel (%p1083) target = $region52
        $region51: #{tpu_custom_call.1} parent=35 // pred_region
          %s1086 = smul.u32 16, %s22
          %s1088 = ssub.s32 1024, 1024
          %1089 = vsyncadd %s1079, %s1088
          %s1090 = smul.addr %s1086, 64
          %s1091 = scalar_lea.hbm %s4, %s1090
          %s1092 = sshll.u32 %s1082, 4
          %s1093 = int_to_ptr.vmem [resolvable:$true] %s1092
          %1098 = dma.vmem_to_hbm [thread:$0]  %s1093, 1024, %s1091, %s1079, 64, 64, 4
        $region52: #{tpu_custom_call.1} parent=35 // pred_fallthru
          _
      $region36: #{tpu_custom_call.1} parent=5 // pred_fallthru
        _
      %p1099 = scmp.le.s32.totalorder 2, %s17
      // Predicated region
      $region53: #{tpu_custom_call.1} parent=5 // pred_check
        %p1100 = pneg %p1099
      $region54: #{tpu_custom_call.1} parent=5 // pred_check_branch
        %1102 = sbr.rel (%p1100) target = $region56
      $region55: #{tpu_custom_call.1} parent=5 // pred_region
        %s1103 = ssub.s32 %s17, 2
        // Predicated region
        $region57: #{tpu_custom_call.1} parent=55 // pred_check
          %p1104 = pneg %p135
        $region58: #{tpu_custom_call.1} parent=55 // pred_check_branch
          %1106 = sbr.rel (%p1104) target = $region60
        $region59: #{tpu_custom_call.1} parent=55 // pred_region
          %s1107 = sand.u32 %s120, 1
          %s1108 = scalar_lea.sflag [#allocation4], %s1107
          %s1109 = sand.u32 %s120, 1
          %s1110 = smul.addr %s1109, 64
          %s1111 = scalar_lea.vmem [#allocation8], %s1110
          %1112 = dma.done %s1108, 1024
        $region60: #{tpu_custom_call.1} parent=55 // pred_fallthru
          _
      $region56: #{tpu_custom_call.1} parent=5 // pred_fallthru
        _
    $region6: #{tpu_custom_call.1} parent=1 // loop_footer
      %s21 = sadd.s32 1, %s17
    $region7: #{tpu_custom_call.1} parent=1 // loop_footer_branch
      %16 = sbr.rel target = $region3
    $region8: #{tpu_custom_call.1} parent=1 // loop_exit
      _
    %1113 = vsyncpa [#allocation3], 1
    %s1114 = scalar_lea.sflag [#allocation3], 1
    %1115 = vsyncpa %s1114, 1
    %1116 = vsyncpa [#allocation6], 1
    %1117 = vsyncpa [#allocation4], 1
    %s1118 = scalar_lea.sflag [#allocation4], 1
    %1119 = vsyncpa %s1118, 1

</llo_original>
